<compile_context>
chip_gen: v7x
topology: tpu7x:2x2x1
jax: 0.10.0
libtpu: 0.0.40
codegen_flags: <defaults>
</compile_context>

<pallas_src>
import functools

import numpy as np
import jax
import jax.numpy as jnp
from jax.experimental import pallas as pl
from jax.experimental.pallas import tpu as pltpu

_LN_EPS = 1e-5


def _round_up(x: int, m: int) -> int:
    return (x + m - 1) // m * m


def _encoder_kernel(bid_ref, x_ref, w1_ref, w2_ref, p_ref, o_ref):
    """Fused Linear -> SiLU -> Linear -> LayerNorm on one row tile.

    bid_ref: (n_tiles,) int32 scalar-prefetch (consumed by index_maps only)
    x_ref  : (tile_n, in_pad)   input rows (feature dim zero-padded)
    w1_ref : (in_pad, dim)      first linear weight of this tile's branch
    w2_ref : (dim, dim)         second linear weight of this tile's branch
    p_ref  : (4, dim)           packed rows = [b1, b2, ln_gamma, ln_beta] (f32)
    o_ref  : (tile_n, dim)
    """
    del bid_ref  # used only by the index_maps to pick the weight slab
    w1 = w1_ref[...]
    w2 = w2_ref[...]

    # Linear 1 (MXU, f32 accumulate) + bias, then SiLU (sigmoid -> EUP slot).
    h = jnp.dot(x_ref[...].astype(w1.dtype), w1, preferred_element_type=jnp.float32)
    h = h + p_ref[0:1, :]
    h = h * jax.nn.sigmoid(h)

    # Linear 2 (MXU) + bias.
    h = jnp.dot(h.astype(w2.dtype), w2, preferred_element_type=jnp.float32)
    h = h + p_ref[1:2, :]

    # LayerNorm over the lane axis (PyTorch default eps).
    # var = E[h^2] - mean^2: two independent cross-lane reductions that issue
    # back-to-back instead of a dependent second pass over the (tile_n, 128)
    # f32 tile.  Guard against tiny negative values from cancellation.
    dim = h.shape[-1]
    inv_d = 1.0 / dim
    s1 = jnp.sum(h, axis=-1, keepdims=True)
    s2 = jnp.sum(h * h, axis=-1, keepdims=True)
    mean = s1 * inv_d
    var = jnp.maximum(s2 * inv_d - mean * mean, 0.0)
    h = (h - mean) * jax.lax.rsqrt(var + _LN_EPS)
    o_ref[...] = (h * p_ref[2:3, :] + p_ref[3:4, :]).astype(o_ref.dtype)


def pack_encoder_params(params, matmul_dtype=jnp.float32):
    """Stack per-branch parameters into fused slabs (done once, outside jit).

    Returns dict:
      w1 : [3, in_pad, dim]  (matmul_dtype)  zero-padded along in_features
      w2 : [3, dim, dim]     (matmul_dtype)
      ln : [3, 4, dim]       f32, rows = [b1, b2, ln_gamma, ln_beta]
    """
    branches = ("atm", "bnd", "ang")
    in_pad = _round_up(max(params[b]["w1"].shape[0] for b in branches), 8)
    w1s, w2s, pks = [], [], []
    for b in branches:
        p = params[b]
        w1 = jnp.pad(p["w1"], ((0, in_pad - p["w1"].shape[0]), (0, 0)))
        w1s.append(w1.astype(matmul_dtype))
        w2s.append(p["w2"].astype(matmul_dtype))
        pks.append(
            jnp.stack([p["b1"], p["b2"], p["gamma"], p["beta"]]).astype(jnp.float32)
        )
    return dict(w1=jnp.stack(w1s), w2=jnp.stack(w2s), ln=jnp.stack(pks))


@functools.partial(jax.jit, static_argnames=("out_dtype",))
def encoder_forward(x_atm, x_bnd, x_ang, packed, out_dtype=jnp.float32):
    """ALIGNN Encoder.forward: all three embed branches in one pallas_call."""
    w1, w2, ln = packed["w1"], packed["w2"], packed["ln"]
    n_branches, in_pad, dim = w1.shape
    xs = (x_atm, x_bnd, x_ang)
    n_rows = tuple(int(x.shape[0]) for x in xs)
    n_max = max(n_rows)

    # Row tile: cap raised to 1024 rows (per-step overhead amortization),
    # multiple of 16 (bf16 sublane packing).  For small graphs aim at >= 2
    # tiles on the largest branch so the 1-D parallel grid spans both v7x
    # TensorCores; for large graphs 1024-row tiles give plenty of steps.
    tile_n = min(_round_up(max((n_max + 1) // 2, 8), 16), 1024)

    # MoE-style grouping: each branch padded only to its own multiple of tile_n,
    # concatenated along rows; per-tile branch id is scalar-prefetched and
    # selects the weight slab in the index_maps (no pad-to-max-branch waste).
    n_pads = tuple(_round_up(n, tile_n) for n in n_rows)
    offs = (0, n_pads[0], n_pads[0] + n_pads[1])
    total = sum(n_pads)
    n_tiles = total // tile_n

    def _pad(x, n_pad):
        # Row + feature zero-padding only; dtype cast happens once, in-kernel.
        return jnp.pad(x, ((0, n_pad - x.shape[0]), (0, in_pad - x.shape[1])))

    x_cat = jnp.concatenate([_pad(x, p) for x, p in zip(xs, n_pads)], axis=0)

    branch_ids = jnp.asarray(
        np.repeat(np.arange(n_branches, dtype=np.int32),
                  [p // tile_n for p in n_pads])
    )

    w_itemsize = jnp.dtype(w1.dtype).itemsize
    out_itemsize = jnp.dtype(out_dtype).itemsize
    cost = pl.CostEstimate(
        flops=2 * total * dim * (in_pad + dim),
        transcendentals=total * (dim + 1),  # sigmoid per element + rsqrt per row
        bytes_accessed=(
            x_cat.size * x_cat.dtype.itemsize
            + (w1.size + w2.size) * w_itemsize
            + ln.size * 4
            + total * dim * out_itemsize
        ),
    )

    # NOTE: the atm branch's one-hot input is handled by the same K<=in_pad
    # matmul; a dedicated embedding-lookup would break branch fusion for a
    # negligible win at these sizes.
    out = pl.pallas_call(
        _encoder_kernel,
        out_shape=jax.ShapeDtypeStruct((total, dim), out_dtype),
        grid_spec=pltpu.PrefetchScalarGridSpec(
            num_scalar_prefetch=1,
            grid=(n_tiles,),
            in_specs=[
                # x rows for this tile
                pl.BlockSpec((tile_n, in_pad), lambda t, bid: (t, 0)),
                # branch-selected weight slabs (data-dependent via prefetch)
                pl.BlockSpec((None, in_pad, dim), lambda t, bid: (bid[t], 0, 0)),
                pl.BlockSpec((None, dim, dim), lambda t, bid: (bid[t], 0, 0)),
                pl.BlockSpec((None, 4, dim), lambda t, bid: (bid[t], 0, 0)),
            ],
            out_specs=pl.BlockSpec((tile_n, dim), lambda t, bid: (t, 0)),
        ),
        compiler_params=pltpu.CompilerParams(
            dimension_semantics=("parallel",),
            # > v5e's 16 MiB scoped default, < v7x's 64 MiB physical VMEM;
            # plenty for tile_n=1024 double-buffered + internal scratch.
            vmem_limit_bytes=48 * 1024 * 1024,
        ),
        cost_estimate=cost,
    )(branch_ids, x_cat, w1, w2, ln)

    return tuple(out[offs[b]: offs[b] + n_rows[b]] for b in range(n_branches))


def _init_branch_params(key, in_dim, dim):
    """Deterministic synthetic parameters (PyTorch-Linear-like uniform init)."""
    k1, k2, k3, k4 = jax.random.split(key, 4)
    bound1 = 1.0 / jnp.sqrt(in_dim)
    bound2 = 1.0 / jnp.sqrt(dim)
    return dict(
        w1=jax.random.uniform(k1, (in_dim, dim), jnp.float32, -bound1, bound1),
        b1=jax.random.uniform(k2, (dim,), jnp.float32, -bound1, bound1),
        w2=jax.random.uniform(k3, (dim, dim), jnp.float32, -bound2, bound2),
        b2=jax.random.uniform(k4, (dim,), jnp.float32, -bound2, bound2),
        gamma=jnp.ones((dim,), jnp.float32),
        beta=jnp.zeros((dim,), jnp.float32),
    )


def _reference_branch(x, p):
    h = x @ p["w1"] + p["b1"]
    h = h * jax.nn.sigmoid(h)
    h = h @ p["w2"] + p["b2"]
    mean = jnp.mean(h, axis=-1, keepdims=True)
    var = jnp.mean((h - mean) ** 2, axis=-1, keepdims=True)
    h = (h - mean) / jnp.sqrt(var + _LN_EPS)
    return h * p["gamma"] + p["beta"]


if __name__ == "__main__":
    num_species = 5
    init_bnd_dim = 4
    init_ang_dim = 4
    dim = 128

    key = jax.random.PRNGKey(0)
    k_par, k_dat = jax.random.split(key)
    kp1, kp2, kp3 = jax.random.split(k_par, 3)

    params = {
        "atm": _init_branch_params(kp1, num_species, dim),
        "bnd": _init_branch_params(kp2, init_bnd_dim, dim),
        "ang": _init_branch_params(kp3, init_ang_dim, dim),
    }

    packed_f32 = pack_encoder_params(params, matmul_dtype=jnp.float32)
    packed_bf16 = pack_encoder_params(params, matmul_dtype=jnp.bfloat16)

    def make_inputs(k, n_atm, n_bnd, n_ang):
        k1, k2, k3 = jax.random.split(k, 3)
        species = jax.random.randint(k1, (n_atm,), 0, num_species)
        x_atm = jax.nn.one_hot(species, num_species, dtype=jnp.float32)
        x_bnd = jax.random.normal(k2, (n_bnd, init_bnd_dim), jnp.float32)
        x_ang = jax.random.normal(k3, (n_ang, init_ang_dim), jnp.float32)
        return x_atm, x_bnd, x_ang

    # Two configs: tiny non-multiple-of-8 rows (padding path), and an
    # imbalanced one exercising multiple tiles per branch + the scalar-prefetch
    # branch-id selection.
    for (n_atm, n_bnd, n_ang) in [(13, 30, 21), (13, 50, 300)]:
        xs = make_inputs(k_dat, n_atm, n_bnd, n_ang)
        refs = [
            _reference_branch(x, params[b])
            for x, b in zip(xs, ("atm", "bnd", "ang"))
        ]

        # --- f32 matmul operands, f32 output: matches the reference ----------
        outs = jax.block_until_ready(encoder_forward(*xs, packed_f32))
        for o, r, n in zip(outs, refs, (n_atm, n_bnd, n_ang)):
            assert o.shape == (n, dim)
            assert jnp.allclose(o, r, atol=5e-5, rtol=5e-5)

        # --- bf16 matmul operands + bf16 output (fast path), f32 LN math -----
        outs_b = jax.block_until_ready(
            encoder_forward(*xs, packed_bf16, out_dtype=jnp.bfloat16)
        )
        for o, r, n in zip(outs_b, refs, (n_atm, n_bnd, n_ang)):
            assert o.shape == (n, dim)
            assert o.dtype == jnp.bfloat16
            assert jnp.allclose(o.astype(jnp.float32), r, atol=1e-1, rtol=1e-1)

    print("KERNEL_OK")
</pallas_src>

<mosaic_0001>
module attributes {stable_mosaic.version = 11 : i64} {
  func.func @_encoder_kernel(%arg0: i32, %arg1: memref<5xi32, #tpu.memory_space<smem>>, %arg2: memref<16x8xf32, #tpu.memory_space<vmem>>, %arg3: memref<1x8x128xf32, #tpu.memory_space<vmem>>, %arg4: memref<1x128x128xf32, #tpu.memory_space<vmem>>, %arg5: memref<1x4x128xf32, #tpu.memory_space<vmem>>, %arg6: memref<16x128xf32, #tpu.memory_space<vmem>>) attributes {dimension_semantics = [#tpu.dimension_semantics<parallel>], iteration_bounds = array<i64: 5>, scalar_prefetch = 1 : i64, scratch_operands = 0 : i64, tpu.core_type = #tpu.core_type<tc>, window_params = [{transform_indices = @transform_0, window_bounds = array<i64: 16, 8>}, {transform_indices = @transform_1, window_bounds = array<i64: 1, 8, 128>}, {transform_indices = @transform_2, window_bounds = array<i64: 1, 128, 128>}, {transform_indices = @transform_3, window_bounds = array<i64: 1, 4, 128>}, {transform_indices = @transform_4, window_bounds = array<i64: 16, 128>}]} {
    %c0 = arith.constant 0 : index
    %c0_0 = arith.constant 0 : index
    %c0_1 = arith.constant 0 : index
    %0 = vector.load %arg3[%c0, %c0_0, %c0_1] : memref<1x8x128xf32, #tpu.memory_space<vmem>>, vector<1x8x128xf32>
    %1 = vector.shape_cast %0 : vector<1x8x128xf32> to vector<8x128xf32>
    %c0_2 = arith.constant 0 : index
    %c0_3 = arith.constant 0 : index
    %c0_4 = arith.constant 0 : index
    %2 = vector.load %arg4[%c0_2, %c0_3, %c0_4] : memref<1x128x128xf32, #tpu.memory_space<vmem>>, vector<1x128x128xf32>
    %3 = vector.shape_cast %2 : vector<1x128x128xf32> to vector<128x128xf32>
    %c0_5 = arith.constant 0 : index
    %c0_6 = arith.constant 0 : index
    %4 = vector.load %arg2[%c0_5, %c0_6] : memref<16x8xf32, #tpu.memory_space<vmem>>, vector<16x8xf32>
    %cst = arith.constant dense<0.000000e+00> : vector<16x128xf32>
    %5 = tpu.matmul %4, %1, %cst {dimension_numbers = #tpu.dot_dimension_numbers<[1], [0], [0], [1], [0, 0, 1, 1], [], []>} : vector<16x8xf32>, vector<8x128xf32>, vector<16x128xf32> -> vector<16x128xf32>
    %c0_7 = arith.constant 0 : index
    %c0_8 = arith.constant 0 : index
    %c0_9 = arith.constant 0 : index
    %6 = vector.load %arg5[%c0_7, %c0_8, %c0_9] : memref<1x4x128xf32, #tpu.memory_space<vmem>>, vector<1x1x128xf32>
    %7 = vector.shape_cast %6 : vector<1x1x128xf32> to vector<1x128xf32>
    %8 = vector.broadcast %7 : vector<1x128xf32> to vector<16x128xf32>
    %9 = arith.addf %5, %8 : vector<16x128xf32>
    %10 = arith.negf %9 : vector<16x128xf32>
    %11 = math.exp %10 : vector<16x128xf32>
    %cst_10 = arith.constant 1.000000e+00 : f32
    %12 = vector.broadcast %cst_10 : f32 to vector<16x128xf32>
    %13 = arith.addf %12, %11 : vector<16x128xf32>
    %14 = arith.divf %12, %13 : vector<16x128xf32>
    %15 = arith.mulf %9, %14 : vector<16x128xf32>
    %cst_11 = arith.constant dense<0.000000e+00> : vector<16x128xf32>
    %16 = tpu.matmul %15, %3, %cst_11 {dimension_numbers = #tpu.dot_dimension_numbers<[1], [0], [0], [1], [0, 0, 1, 1], [], []>} : vector<16x128xf32>, vector<128x128xf32>, vector<16x128xf32> -> vector<16x128xf32>
    %c0_12 = arith.constant 0 : index
    %c1 = arith.constant 1 : index
    %c0_13 = arith.constant 0 : index
    %17 = vector.load %arg5[%c0_12, %c1, %c0_13] : memref<1x4x128xf32, #tpu.memory_space<vmem>>, vector<1x1x128xf32>
    %18 = vector.shape_cast %17 : vector<1x1x128xf32> to vector<1x128xf32>
    %19 = vector.broadcast %18 : vector<1x128xf32> to vector<16x128xf32>
    %20 = arith.addf %16, %19 : vector<16x128xf32>
    %cst_14 = arith.constant dense<0.000000e+00> : vector<16xf32>
    %21 = vector.multi_reduction <add>, %20, %cst_14 [1] : vector<16x128xf32> to vector<16xf32>
    %22 = vector.shape_cast %21 : vector<16xf32> to vector<16x1xf32>
    %23 = arith.mulf %20, %20 : vector<16x128xf32>
    %cst_15 = arith.constant dense<0.000000e+00> : vector<16xf32>
    %24 = vector.multi_reduction <add>, %23, %cst_15 [1] : vector<16x128xf32> to vector<16xf32>
    %25 = vector.shape_cast %24 : vector<16xf32> to vector<16x1xf32>
    %cst_16 = arith.constant 7.812500e-03 : f32
    %26 = vector.broadcast %cst_16 : f32 to vector<16x1xf32>
    %27 = arith.mulf %22, %26 : vector<16x1xf32>
    %cst_17 = arith.constant 7.812500e-03 : f32
    %28 = vector.broadcast %cst_17 : f32 to vector<16x1xf32>
    %29 = arith.mulf %25, %28 : vector<16x1xf32>
    %30 = arith.mulf %27, %27 : vector<16x1xf32>
    %31 = arith.subf %29, %30 : vector<16x1xf32>
    %cst_18 = arith.constant 0.000000e+00 : f32
    %32 = vector.broadcast %cst_18 : f32 to vector<16x1xf32>
    %33 = arith.maximumf %31, %32 : vector<16x1xf32>
    %34 = vector.broadcast %27 : vector<16x1xf32> to vector<16x128xf32>
    %35 = arith.subf %20, %34 : vector<16x128xf32>
    %cst_19 = arith.constant 9.99999974E-6 : f32
    %36 = vector.broadcast %cst_19 : f32 to vector<16x1xf32>
    %37 = arith.addf %33, %36 : vector<16x1xf32>
    %38 = math.rsqrt %37 : vector<16x1xf32>
    %39 = vector.broadcast %38 : vector<16x1xf32> to vector<16x128xf32>
    %40 = arith.mulf %35, %39 : vector<16x128xf32>
    %c0_20 = arith.constant 0 : index
    %c2 = arith.constant 2 : index
    %c0_21 = arith.constant 0 : index
    %41 = vector.load %arg5[%c0_20, %c2, %c0_21] : memref<1x4x128xf32, #tpu.memory_space<vmem>>, vector<1x1x128xf32>
    %42 = vector.shape_cast %41 : vector<1x1x128xf32> to vector<1x128xf32>
    %43 = vector.broadcast %42 : vector<1x128xf32> to vector<16x128xf32>
    %44 = arith.mulf %40, %43 : vector<16x128xf32>
    %c0_22 = arith.constant 0 : index
    %c3 = arith.constant 3 : index
    %c0_23 = arith.constant 0 : index
    %45 = vector.load %arg5[%c0_22, %c3, %c0_23] : memref<1x4x128xf32, #tpu.memory_space<vmem>>, vector<1x1x128xf32>
    %46 = vector.shape_cast %45 : vector<1x1x128xf32> to vector<1x128xf32>
    %47 = vector.broadcast %46 : vector<1x128xf32> to vector<16x128xf32>
    %48 = arith.addf %44, %47 : vector<16x128xf32>
    %c0_24 = arith.constant 0 : index
    %c0_25 = arith.constant 0 : index
    %49 = vector.load %arg6[%c0_24, %c0_25] : memref<16x128xf32, #tpu.memory_space<vmem>>, vector<16x128xf32>
    tpu.vector_store %arg6[%c0_24, %c0_25], %48 {strides = array<i32>} : memref<16x128xf32, #tpu.memory_space<vmem>>, vector<16x128xf32>,
    return
  }
  func.func @transform_0(%arg0: i32, %arg1: memref<5xi32, #tpu.memory_space<smem>>) -> (i32, i32) {
    %c0_i32 = arith.constant 0 : i32
    %c0_i32_0 = arith.constant 0 : i32
    return %arg0, %c0_i32 : i32, i32
  }
  func.func @transform_1(%arg0: i32, %arg1: memref<5xi32, #tpu.memory_space<smem>>) -> (i32, i32, i32) {
    %0 = arith.index_cast %arg0 : i32 to index
    %1 = memref.load %arg1[%0] : memref<5xi32, #tpu.memory_space<smem>>
    %c0_i32 = arith.constant 0 : i32
    %c0_i32_0 = arith.constant 0 : i32
    %c0_i32_1 = arith.constant 0 : i32
    return %1, %c0_i32, %c0_i32_0 : i32, i32, i32
  }
  func.func @transform_2(%arg0: i32, %arg1: memref<5xi32, #tpu.memory_space<smem>>) -> (i32, i32, i32) {
    %0 = arith.index_cast %arg0 : i32 to index
    %1 = memref.load %arg1[%0] : memref<5xi32, #tpu.memory_space<smem>>
    %c0_i32 = arith.constant 0 : i32
    %c0_i32_0 = arith.constant 0 : i32
    %c0_i32_1 = arith.constant 0 : i32
    return %1, %c0_i32, %c0_i32_0 : i32, i32, i32
  }
  func.func @transform_3(%arg0: i32, %arg1: memref<5xi32, #tpu.memory_space<smem>>) -> (i32, i32, i32) {
    %0 = arith.index_cast %arg0 : i32 to index
    %1 = memref.load %arg1[%0] : memref<5xi32, #tpu.memory_space<smem>>
    %c0_i32 = arith.constant 0 : i32
    %c0_i32_0 = arith.constant 0 : i32
    %c0_i32_1 = arith.constant 0 : i32
    return %1, %c0_i32, %c0_i32_0 : i32, i32, i32
  }
  func.func @transform_4(%arg0: i32, %arg1: memref<5xi32, #tpu.memory_space<smem>>) -> (i32, i32) {
    %c0_i32 = arith.constant 0 : i32
    %c0_i32_0 = arith.constant 0 : i32
    return %arg0, %c0_i32 : i32, i32
  }
}

</mosaic_0001>

<llo_original>
// kernel: encoder_forward.1
$region0: #{encoder_forward.1}
  #allocation0 [shape = 'u32[]', space=smem, size = 0x4, offset = 0x4, fixed_abs, tag = 'smem constant byte address 0x4 - core index']
  #allocation1 [shape = 'u32[144,128]{1,0:T(1,128)}', space=vmem, size = 0x12000, scoped, tag = 'internal scratch']
  #allocation2 [shape = 's32[1]{0}', space=sflag, size = 0x4, scoped, tag = 'scoped memory for encoder_forward.1']
  #allocation3 [shape = 'u8[512]{0}', space=smem, size = 0x200, scoped, tag = 'prefetched SMEM operand 0']
  %s0 = inlined_call_operand.vmem [shape: s32[5], index: 0, kind: input, shape index: {}]
  %s1 = inlined_call_operand.vmem [shape: f32[80,8], index: 1, kind: input, shape index: {}]
  %s2 = inlined_call_operand.vmem [shape: f32[3,8,128], index: 2, kind: input, shape index: {}]
  %s3 = inlined_call_operand.hbm [shape: f32[3,128,128], index: 3, kind: input, shape index: {}]
  %s4 = inlined_call_operand.vmem [shape: f32[3,4,128], index: 4, kind: input, shape index: {}]
  %s5 = inlined_call_operand.vmem [shape: f32[80,128], index: 5, kind: output, shape index: {}]
  %s6 = sld [smem:[#allocation0]]
  $region53: #{encoder_forward.1} parent=0
    _
  %s8 = ssub.s32 1, %s6
  %s9 = scalar_select 0, %s8, %s6
  %s10 = sshll.u32 %s0, 4
  %s11 = int_to_ptr.vmem [resolvable:$true] %s10
  %13 = dma.vmem_to_smem %s11, 16, [#allocation3], [#allocation2]
  %14 = dma.done [#allocation2], 16
  %15 = sfence
  $region1: #{encoder_forward.1} parent=0
    #allocation4 [shape = 'u8[131072]{0}', space=vmem, size = 0x20000, scoped, tag = 'input window, operand 3']
    #allocation5 [shape = 's32[2]{0}', space=sflag, size = 0x8, scoped, tag = 'scoped memory for encoder_forward.1']
    %16 = vsyncpa [#allocation5], 0
    %s17 = scalar_lea.sflag [#allocation5], 1
    %18 = vsyncpa %s17, 0
    loop: start=0, step=1, limit=7
    $region2: #{encoder_forward.1} parent=1 // loop_pre_header
      _
    $region3: #{encoder_forward.1} parent=1 // loop_header
      %s20 = sphi 0, %s24
      %p21 = scmp.ge.s32.totalorder %s20, 7
      %s30 = sphi 0, %s32
      %s33 = sphi 0, %s30
      %s34 = sphi 0, %s33
      %s50 = sphi 0, %s34
      %s58 = sphi 0, %s60
      %s61 = sphi 0, %s58
      %s62 = sphi 0, %s61
      %s78 = sphi 0, %s62
      %s86 = sphi 0, %s88
      %s89 = sphi 0, %s86
      %s90 = sphi 0, %s89
      %s106 = sphi 0, %s90
      %s114 = sphi 0, %s116
      %s117 = sphi 0, %s114
      %s118 = sphi 0, %s117
      %s134 = sphi 0, %s118
      %s140 = sphi 0, %s142
      %s143 = sphi 0, %s140
      %s144 = sphi 0, %s143
      %s160 = sphi 0, %s144
    $region4: #{encoder_forward.1} parent=1 // loop_header_branch
      %23 = sbr.rel (%p21) target = $region8
    $region5: #{encoder_forward.1} parent=1 // loop_body
      %s25 = ssub.s32 %s20, 1
      %s26 = ssub.s32 %s20, 2
      %s27 = sadd.s32 %s20, 1
      %s28 = ssub.s32 %s20, %s27
      %p29 = scmp.eq.s32.totalorder %s28, 0
      %s31 = sadd.s32 %s30, 1
      %s32 = scalar_select %p29, %s30, %s31
      %p35 = pneg %p29
      %p36 = scmp.eq.s32.totalorder %s20, 4
      %p37 = por %p35, %p36
      %p38 = scmp.ne.s32.totalorder %s30, %s33
      %p39 = scmp.eq.s32.totalorder %s20, 0
      %p40 = por %p38, %p39
      %p41 = scmp.ne.s32.totalorder %s30, %s33
      %p42 = scmp.eq.s32.totalorder %s25, 4
      %p43 = por %p41, %p42
      %p44 = scmp.ne.s32.totalorder %s33, %s34
      %p45 = scmp.eq.s32.totalorder %s25, 0
      %p46 = por %p44, %p45
      %p47 = scmp.ne.s32.totalorder %s33, %s34
      %p48 = scmp.eq.s32.totalorder %s26, 4
      %p49 = por %p47, %p48
      %p51 = scmp.ne.s32.totalorder %s34, %s50
      %p52 = scmp.eq.s32.totalorder %s26, 0
      %p53 = por %p51, %p52
      %s54 = sld [smem:[#allocation3 + %s20]]
      %s55 = sld [smem:[#allocation3 + %s27]]
      %s56 = ssub.s32 %s54, %s55
      %p57 = scmp.eq.s32.totalorder %s56, 0
      %s59 = sadd.s32 %s58, 1
      %s60 = scalar_select %p57, %s58, %s59
      %p63 = pneg %p57
      %p64 = scmp.eq.s32.totalorder %s20, 4
      %p65 = por %p63, %p64
      %p66 = scmp.ne.s32.totalorder %s58, %s61
      %p67 = scmp.eq.s32.totalorder %s20, 0
      %p68 = por %p66, %p67
      %p69 = scmp.ne.s32.totalorder %s58, %s61
      %p70 = scmp.eq.s32.totalorder %s25, 4
      %p71 = por %p69, %p70
      %p72 = scmp.ne.s32.totalorder %s61, %s62
      %p73 = scmp.eq.s32.totalorder %s25, 0
      %p74 = por %p72, %p73
      %p75 = scmp.ne.s32.totalorder %s61, %s62
      %p76 = scmp.eq.s32.totalorder %s26, 4
      %p77 = por %p75, %p76
      %p79 = scmp.ne.s32.totalorder %s62, %s78
      %p80 = scmp.eq.s32.totalorder %s26, 0
      %p81 = por %p79, %p80
      %s82 = sld [smem:[#allocation3 + %s20]]
      %s83 = sld [smem:[#allocation3 + %s27]]
      %s84 = ssub.s32 %s82, %s83
      %p85 = scmp.eq.s32.totalorder %s84, 0
      %s87 = sadd.s32 %s86, 1
      %s88 = scalar_select %p85, %s86, %s87
      %p91 = pneg %p85
      %p92 = scmp.eq.s32.totalorder %s20, 4
      %p93 = por %p91, %p92
      %p94 = scmp.ne.s32.totalorder %s86, %s89
      %p95 = scmp.eq.s32.totalorder %s20, 0
      %p96 = por %p94, %p95
      %p97 = scmp.ne.s32.totalorder %s86, %s89
      %p98 = scmp.eq.s32.totalorder %s25, 4
      %p99 = por %p97, %p98
      %p100 = scmp.ne.s32.totalorder %s89, %s90
      %p101 = scmp.eq.s32.totalorder %s25, 0
      %p102 = por %p100, %p101
      %p103 = scmp.ne.s32.totalorder %s89, %s90
      %p104 = scmp.eq.s32.totalorder %s26, 4
      %p105 = por %p103, %p104
      %p107 = scmp.ne.s32.totalorder %s90, %s106
      %p108 = scmp.eq.s32.totalorder %s26, 0
      %p109 = por %p107, %p108
      %s110 = sld [smem:[#allocation3 + %s20]]
      %s111 = sld [smem:[#allocation3 + %s27]]
      %s112 = ssub.s32 %s110, %s111
      %p113 = scmp.eq.s32.totalorder %s112, 0
      %s115 = sadd.s32 %s114, 1
      %s116 = scalar_select %p113, %s114, %s115
      %p119 = pneg %p113
      %p120 = scmp.eq.s32.totalorder %s20, 4
      %p121 = por %p119, %p120
      %p122 = scmp.ne.s32.totalorder %s114, %s117
      %p123 = scmp.eq.s32.totalorder %s20, 0
      %p124 = por %p122, %p123
      %p125 = scmp.ne.s32.totalorder %s114, %s117
      %p126 = scmp.eq.s32.totalorder %s25, 4
      %p127 = por %p125, %p126
      %p128 = scmp.ne.s32.totalorder %s117, %s118
      %p129 = scmp.eq.s32.totalorder %s25, 0
      %p130 = por %p128, %p129
      %p131 = scmp.ne.s32.totalorder %s117, %s118
      %p132 = scmp.eq.s32.totalorder %s26, 4
      %p133 = por %p131, %p132
      %p135 = scmp.ne.s32.totalorder %s118, %s134
      %p136 = scmp.eq.s32.totalorder %s26, 0
      %p137 = por %p135, %p136
      %s138 = ssub.s32 %s20, %s27
      %p139 = scmp.eq.s32.totalorder %s138, 0
      %s141 = sadd.s32 %s140, 1
      %s142 = scalar_select %p139, %s140, %s141
      %p145 = pneg %p139
      %p146 = scmp.eq.s32.totalorder %s20, 4
      %p147 = por %p145, %p146
      %p148 = scmp.ne.s32.totalorder %s140, %s143
      %p149 = scmp.eq.s32.totalorder %s20, 0
      %p150 = por %p148, %p149
      %p151 = scmp.ne.s32.totalorder %s140, %s143
      %p152 = scmp.eq.s32.totalorder %s25, 4
      %p153 = por %p151, %p152
      %p154 = scmp.ne.s32.totalorder %s143, %s144
      %p155 = scmp.eq.s32.totalorder %s25, 0
      %p156 = por %p154, %p155
      %p157 = scmp.ne.s32.totalorder %s143, %s144
      %p158 = scmp.eq.s32.totalorder %s26, 4
      %p159 = por %p157, %p158
      %p161 = scmp.ne.s32.totalorder %s144, %s160
      %p162 = scmp.eq.s32.totalorder %s26, 0
      %p163 = por %p161, %p162
      %p164 = scmp.le.s32.totalorder 1, %s20
      %p165 = scmp.lt.s32.totalorder %s20, 6
      %p166 = pnand %p164, %p165
      %p167 = pneg %p166
      // Predicated region
      $region9: #{encoder_forward.1} parent=5 // pred_check
        _
      $region10: #{encoder_forward.1} parent=5 // pred_check_branch
        %169 = sbr.rel (%p166) target = $region12
      $region11: #{encoder_forward.1} parent=5 // pred_region
        %s170 = ssub.s32 %s20, 1
      $region12: #{encoder_forward.1} parent=5 // pred_fallthru
        _
      %p171 = scmp.lt.s32.totalorder %s20, 5
      // Predicated region
      $region13: #{encoder_forward.1} parent=5 // pred_check
        %p172 = pneg %p171
      $region14: #{encoder_forward.1} parent=5 // pred_check_branch
        %174 = sbr.rel (%p172) target = $region16
      $region15: #{encoder_forward.1} parent=5 // pred_region
        // Predicated region
        $region17: #{encoder_forward.1} parent=15 // pred_check
          %p175 = pneg %p40
        $region18: #{encoder_forward.1} parent=15 // pred_check_branch
          %177 = sbr.rel (%p175) target = $region20
        $region19: #{encoder_forward.1} parent=15 // pred_region
          %s178 = smul.u32 2, %s20
          %p179 = scmp.lt.s32.totalorder %s178, 9
          %s180 = scalar_select %p179, %s178, 9
          %s181 = smul.addr %s180, 8
          %s182 = scalar_lea.vmem %s1, %s181
          %s183 = smul.u32 2, %s20
        $region20: #{encoder_forward.1} parent=15 // pred_fallthru
          _
        // Predicated region
        $region21: #{encoder_forward.1} parent=15 // pred_check
          %p184 = pneg %p68
        $region22: #{encoder_forward.1} parent=15 // pred_check_branch
          %186 = sbr.rel (%p184) target = $region24
        $region23: #{encoder_forward.1} parent=15 // pred_region
          %s187 = sld [smem:[#allocation3 + %s20]]
          %p188 = scmp.lt.s32.totalorder %s187, 2
          %s189 = scalar_select %p188, %s187, 2
          %s190 = smul.addr %s189, 8
          %s191 = scalar_lea.vmem %s2, %s190
          %s192 = sld [smem:[#allocation3 + %s20]]
        $region24: #{encoder_forward.1} parent=15 // pred_fallthru
          _
        // Predicated region
        $region25: #{encoder_forward.1} parent=15 // pred_check
          %p193 = pneg %p96
        $region26: #{encoder_forward.1} parent=15 // pred_check_branch
          %195 = sbr.rel (%p193) target = $region28
        $region27: #{encoder_forward.1} parent=15 // pred_region
          %s196 = sand.u32 %s86, 1
          %s197 = scalar_lea.sflag [#allocation5], %s196
          %s198 = sand.u32 %s86, 1
          %s199 = smul.addr %s198, 128
          %s200 = scalar_lea.vmem [#allocation4], %s199
          %s201 = sld [smem:[#allocation3 + %s20]]
          %s203 = ssub.s32 2048, 2048
          %204 = vsyncadd %s197, %s203
          %s205 = smul.addr %s201, 16
          %s206 = smul.addr %s205, 128
          %s207 = scalar_lea.hbm %s3, %s206
          %s208 = sshll.u32 %s200, 4
          %s209 = int_to_ptr.vmem [resolvable:$true] %s208
          %214 = dma.hbm_to_vmem [thread:$0]  %s207, 2048, %s209, %s197, 128, 128, 8
        $region28: #{encoder_forward.1} parent=15 // pred_fallthru
          _
        // Predicated region
        $region29: #{encoder_forward.1} parent=15 // pred_check
          %p215 = pneg %p124
        $region30: #{encoder_forward.1} parent=15 // pred_check_branch
          %217 = sbr.rel (%p215) target = $region32
        $region31: #{encoder_forward.1} parent=15 // pred_region
          %s218 = sld [smem:[#allocation3 + %s20]]
          %p219 = scmp.lt.s32.totalorder %s218, 2
          %s220 = scalar_select %p219, %s218, 2
          %s221 = smul.addr %s220, 4
          %s222 = scalar_lea.vmem %s4, %s221
          %s223 = sld [smem:[#allocation3 + %s20]]
        $region32: #{encoder_forward.1} parent=15 // pred_fallthru
          _
      $region16: #{encoder_forward.1} parent=5 // pred_fallthru
        _
      %p224 = scmp.le.s32.totalorder 1, %s20
      %p225 = scmp.lt.s32.totalorder %s20, 6
      %p226 = pnand %p224, %p225
      %p227 = pneg %p226
      // Predicated region
      $region33: #{encoder_forward.1} parent=5 // pred_check
        _
      $region34: #{encoder_forward.1} parent=5 // pred_check_branch
        %229 = sbr.rel (%p226) target = $region36
      $region35: #{encoder_forward.1} parent=5 // pred_region
        %s230 = ssub.s32 %s20, 1
        %s231 = sand.u32 %s89, 1
        %s232 = scalar_lea.sflag [#allocation5], %s231
        %s233 = sand.u32 %s89, 1
        %s234 = smul.addr %s233, 128
        %s235 = scalar_lea.vmem [#allocation4], %s234
        // Predicated region
        $region37: #{encoder_forward.1} parent=35 // pred_check
          %p236 = pneg %p102
        $region38: #{encoder_forward.1} parent=35 // pred_check_branch
          %238 = sbr.rel (%p236) target = $region40
        $region39: #{encoder_forward.1} parent=35 // pred_region
          %239 = dma.done %s232, 2048
        $region40: #{encoder_forward.1} parent=35 // pred_fallthru
          _
        %s240 = smul.u32 2, %s25
        %p241 = scmp.lt.s32.totalorder %s240, 9
        %s242 = scalar_select %p241, %s240, 9
        %s243 = smul.addr %s242, 8
        %s244 = scalar_lea.vmem %s1, %s243
        %p245 = pneg %p46
        %p246 = pneg %p43
        %s247 = sld [smem:[#allocation3 + %s25]]
        %p248 = scmp.lt.s32.totalorder %s247, 2
        %s249 = scalar_select %p248, %s247, 2
        %s250 = smul.addr %s249, 8
        %s251 = scalar_lea.vmem %s2, %s250
        %p252 = pneg %p74
        %p253 = pneg %p71
        %s254 = sand.u32 %s89, 1
        %s255 = scalar_lea.sflag [#allocation5], %s254
        %s256 = sand.u32 %s89, 1
        %s257 = smul.addr %s256, 128
        %s258 = scalar_lea.vmem [#allocation4], %s257
        %p259 = pneg %p102
        %p260 = pneg %p99
        %s261 = sld [smem:[#allocation3 + %s25]]
        %p262 = scmp.lt.s32.totalorder %s261, 2
        %s263 = scalar_select %p262, %s261, 2
        %s264 = smul.addr %s263, 4
        %s265 = scalar_lea.vmem %s4, %s264
        %p266 = pneg %p130
        %p267 = pneg %p127
        %p268 = pneg %p156
        %p269 = pneg %p153
        %s270 = smul.u32 2, %s25
        %p271 = scmp.lt.s32.totalorder %s270, 9
        %s272 = scalar_select %p271, %s270, 9
        %s273 = smul.addr %s272, 8
        %s274 = scalar_lea.vmem %s5, %s273
        %s275 = smul.u32 2, %s25
        %p276 = scmp.lt.s32.totalorder %s275, 9
        %s277 = scalar_select %p276, %s275, 9
        %s278 = smul.addr %s277, 8
        %s279 = scalar_lea.vmem %s1, %s278
        %s280 = smul.u32 2, %s25
        %s281 = sld [smem:[#allocation3 + %s25]]
        %p282 = scmp.lt.s32.totalorder %s281, 2
        %s283 = scalar_select %p282, %s281, 2
        %s284 = smul.addr %s283, 8
        %s285 = scalar_lea.vmem %s2, %s284
        %s286 = sld [smem:[#allocation3 + %s25]]
        %s287 = sld [smem:[#allocation3 + %s25]]
        %s288 = sld [smem:[#allocation3 + %s25]]
        %p289 = scmp.lt.s32.totalorder %s288, 2
        %s290 = scalar_select %p289, %s288, 2
        %s291 = smul.addr %s290, 4
        %s292 = scalar_lea.vmem %s4, %s291
        %s293 = sld [smem:[#allocation3 + %s25]]
        %s294 = smul.u32 2, %s25
        %p295 = scmp.lt.s32.totalorder %s294, 9
        %s296 = scalar_select %p295, %s294, 9
        %s297 = smul.addr %s296, 8
        %s298 = scalar_lea.vmem %s5, %s297
        %s299 = smul.u32 2, %s25
        %v300 = vld [vmem:[%s285] sm:$0xff]
        %v301 = vld [vmem:[%s235] sm:$0xff]
        %v302 = vld [vmem:[%s235 + $0x8] sm:$0xff]
        %v303 = vld [vmem:[%s235 + $0x10] sm:$0xff]
        %v304 = vld [vmem:[%s235 + $0x18] sm:$0xff]
        %v305 = vld [vmem:[%s235 + $0x20] sm:$0xff]
        %v306 = vld [vmem:[%s235 + $0x28] sm:$0xff]
        %v307 = vld [vmem:[%s235 + $0x30] sm:$0xff]
        %v308 = vld [vmem:[%s235 + $0x38] sm:$0xff]
        %v309 = vld [vmem:[%s235 + $0x40] sm:$0xff]
        %v310 = vld [vmem:[%s235 + $0x48] sm:$0xff]
        %v311 = vld [vmem:[%s235 + $0x50] sm:$0xff]
        %v312 = vld [vmem:[%s235 + $0x58] sm:$0xff]
        %v313 = vld [vmem:[%s235 + $0x60] sm:$0xff]
        %v314 = vld [vmem:[%s235 + $0x68] sm:$0xff]
        %v315 = vld [vmem:[%s235 + $0x70] sm:$0xff]
        %v316 = vld [vmem:[%s235 + $0x78] sm:$0xff]
        %v317 = vld [vmem:[%s279] sm:$0xff]
        %v318 = vld [vmem:[%s279 + $0x8] sm:$0xff]
        %v319 = vld [vmem:[%s292] sm:$0x1]
        %v320 = vlaneseq
        %v321 = vshrl.u32 %v320, 7
        %v322 = vsub.s32 0, %v321
        %v323 = vrot.slane %v319, %v322
        %vm324 = vcmask 64512
        %v326 = vsel %vm324, %v317, 0
        %v329 = vsel %vm324, %v318, 0
        %331 = vmatprep.subr.mxu0 0.0
        %332 = vmatpush1.msra.mxu0 %v300
        %333 = vmatprep.subr.mxu0 0.0
        %334 = vmatpush1.msra.mxu0 0.0
        %335 = vmatprep.subr.mxu0 0.0
        %336 = vmatpush1.msra.mxu0 0.0
        %337 = vmatprep.subr.mxu0 0.0
        %338 = vmatpush1.msra.mxu0 0.0
        %339 = vmatprep.subr.mxu0 0.0
        %340 = vmatpush1.msra.mxu0 0.0
        %341 = vmatprep.subr.mxu0 0.0
        %342 = vmatpush1.msra.mxu0 0.0
        %343 = vmatprep.subr.mxu0 0.0
        %344 = vmatpush1.msra.mxu0 0.0
        %345 = vmatprep.subr.mxu0 0.0
        %346 = vmatpush1.msra.mxu0 0.0
        %347 = vmatprep.subr.mxu0 0.0
        %348 = vmatpush1.msra.mxu0 0.0
        %349 = vmatprep.subr.mxu0 0.0
        %350 = vmatpush1.msra.mxu0 0.0
        %351 = vmatprep.subr.mxu0 0.0
        %352 = vmatpush1.msra.mxu0 0.0
        %353 = vmatprep.subr.mxu0 0.0
        %354 = vmatpush1.msra.mxu0 0.0
        %355 = vmatprep.subr.mxu0 0.0
        %356 = vmatpush1.msra.mxu0 0.0
        %357 = vmatprep.subr.mxu0 0.0
        %358 = vmatpush1.msra.mxu0 0.0
        %359 = vmatprep.subr.mxu0 0.0
        %360 = vmatpush1.msra.mxu0 0.0
        %361 = vmatprep.subr.mxu0 0.0
        %362 = vmatpush1.msra.mxu0 0.0
        %363 = vmatprep.subr.mxu0 0.0
        %364 = vmatpush1.msra.mxu0 0.0
        %365 = vmatprep.subr.mxu0 0.0
        %366 = vmatpush1.msra.mxu0 0.0
        %367 = vmatprep.subr.mxu0 0.0
        %368 = vmatpush1.msra.mxu0 0.0
        %369 = vmatprep.subr.mxu0 0.0
        %370 = vmatpush1.msra.mxu0 0.0
        %371 = vmatprep.subr.mxu0 0.0
        %372 = vmatpush1.msra.mxu0 0.0
        %373 = vmatprep.subr.mxu0 0.0
        %374 = vmatpush1.msra.mxu0 0.0
        %375 = vmatprep.subr.mxu0 0.0
        %376 = vmatpush1.msra.mxu0 0.0
        %377 = vmatprep.subr.mxu0 0.0
        %378 = vmatpush1.msra.mxu0 0.0
        %379 = vmatprep.subr.mxu0 0.0
        %380 = vmatpush1.msra.mxu0 0.0
        %381 = vmatprep.subr.mxu0 0.0
        %382 = vmatpush1.msra.mxu0 0.0
        %383 = vmatprep.subr.mxu0 0.0
        %384 = vmatpush1.msra.mxu0 0.0
        %385 = vmatprep.subr.mxu0 0.0
        %386 = vmatpush1.msra.mxu0 0.0
        %387 = vmatprep.subr.mxu0 0.0
        %388 = vmatpush1.msra.mxu0 0.0
        %389 = vmatprep.subr.mxu0 0.0
        %390 = vmatpush1.msra.mxu0 0.0
        %391 = vmatprep.subr.mxu0 0.0
        %392 = vmatpush1.msra.mxu0 0.0
        %393 = vmatprep.subr.mxu0 0.0
        %394 = vmatpush1.msra.mxu0 0.0
        %395 = vmatprep.mubr.f32.mxu0 0.0
        %396 = vmatmul.mubr.f32.gmra.mrb[0].mxu0 %v326
        %v397 = vpop.f32.mrb[0].mxu0
        %v398 = vadd.f32 %v323, %v397
        %v399 = vpop.f32.mrb[0].mxu0
        %400 = vmatprep.mubr.f32.mxu0 0.0
        %401 = vmatmul.mubr.f32.gmra.mrb[0].mxu0 %v329
        %v402 = vpop.f32.mrb[0].mxu0
        %v403 = vadd.f32 %v323, %v402
        %v404 = vpop.f32.mrb[0].mxu0
        %405 = vdwg.mxu0
        %v406 = vxor.u32 %v398, 2147483648
        %v407 = vxor.u32 %v403, 2147483648
        %v408 = vmul.f32 %v406, 1.442695
        %v409 = vpow.pop %v408
        %v410 = vmul.f32 %v407, 1.442695
        %v411 = vpow.pop %v410
        %v412 = vadd.f32 %v409, 1.0
        %v413 = vadd.f32 %v411, 1.0
        %v414 = vrcp.pop %v412
        %v415 = vmul.f32 1.0, %v414
        %v416 = vrcp.pop %v413
        %v417 = vmul.f32 1.0, %v416
        %v418 = vmul.f32 %v398, %v415
        %v419 = vmul.f32 %v403, %v417
        %v420 = vld [vmem:[%s292 + $0x1] sm:$0x1]
        %v421 = vlaneseq
        %v422 = vshrl.u32 %v421, 7
        %v423 = vsub.s32 0, %v422
        %v424 = vrot.slane %v420, %v423
        %425 = vmatprep.subr.mxu0 0.0
        %426 = vmatpush1.msra.mxu0 %v301
        %427 = vmatprep.subr.mxu0 0.0
        %428 = vmatpush1.msra.mxu0 %v302
        %429 = vmatprep.subr.mxu0 0.0
        %430 = vmatpush1.msra.mxu0 %v303
        %431 = vmatprep.subr.mxu0 0.0
        %432 = vmatpush1.msra.mxu0 %v304
        %433 = vmatprep.subr.mxu0 0.0
        %434 = vmatpush1.msra.mxu0 %v305
        %435 = vmatprep.subr.mxu0 0.0
        %436 = vmatpush1.msra.mxu0 %v306
        %437 = vmatprep.subr.mxu0 0.0
        %438 = vmatpush1.msra.mxu0 %v307
        %439 = vmatprep.subr.mxu0 0.0
        %440 = vmatpush1.msra.mxu0 %v308
        %441 = vmatprep.subr.mxu0 0.0
        %442 = vmatpush1.msra.mxu0 %v309
        %443 = vmatprep.subr.mxu0 0.0
        %444 = vmatpush1.msra.mxu0 %v310
        %445 = vmatprep.subr.mxu0 0.0
        %446 = vmatpush1.msra.mxu0 %v311
        %447 = vmatprep.subr.mxu0 0.0
        %448 = vmatpush1.msra.mxu0 %v312
        %449 = vmatprep.subr.mxu0 0.0
        %450 = vmatpush1.msra.mxu0 %v313
        %451 = vmatprep.subr.mxu0 0.0
        %452 = vmatpush1.msra.mxu0 %v314
        %453 = vmatprep.subr.mxu0 0.0
        %454 = vmatpush1.msra.mxu0 %v315
        %455 = vmatprep.subr.mxu0 0.0
        %456 = vmatpush1.msra.mxu0 %v316
        %457 = vmatprep.subr.mxu0 0.0
        %458 = vmatpush1.msra.mxu0 0.0
        %459 = vmatprep.subr.mxu0 0.0
        %460 = vmatpush1.msra.mxu0 0.0
        %461 = vmatprep.subr.mxu0 0.0
        %462 = vmatpush1.msra.mxu0 0.0
        %463 = vmatprep.subr.mxu0 0.0
        %464 = vmatpush1.msra.mxu0 0.0
        %465 = vmatprep.subr.mxu0 0.0
        %466 = vmatpush1.msra.mxu0 0.0
        %467 = vmatprep.subr.mxu0 0.0
        %468 = vmatpush1.msra.mxu0 0.0
        %469 = vmatprep.subr.mxu0 0.0
        %470 = vmatpush1.msra.mxu0 0.0
        %471 = vmatprep.subr.mxu0 0.0
        %472 = vmatpush1.msra.mxu0 0.0
        %473 = vmatprep.subr.mxu0 0.0
        %474 = vmatpush1.msra.mxu0 0.0
        %475 = vmatprep.subr.mxu0 0.0
        %476 = vmatpush1.msra.mxu0 0.0
        %477 = vmatprep.subr.mxu0 0.0
        %478 = vmatpush1.msra.mxu0 0.0
        %479 = vmatprep.subr.mxu0 0.0
        %480 = vmatpush1.msra.mxu0 0.0
        %481 = vmatprep.subr.mxu0 0.0
        %482 = vmatpush1.msra.mxu0 0.0
        %483 = vmatprep.subr.mxu0 0.0
        %484 = vmatpush1.msra.mxu0 0.0
        %485 = vmatprep.subr.mxu0 0.0
        %486 = vmatpush1.msra.mxu0 0.0
        %487 = vmatprep.subr.mxu0 0.0
        %488 = vmatpush1.msra.mxu0 0.0
        %489 = vmatprep.mubr.f32.mxu0 0.0
        %490 = vmatmul.mubr.f32.gmra.mrb[0].mxu0 %v418
        %v491 = vpop.f32.mrb[0].mxu0
        %v492 = vadd.f32 %v424, %v491
        %v493 = vpop.f32.mrb[0].mxu0
        %494 = vmatprep.mubr.f32.mxu0 0.0
        %495 = vmatmul.mubr.f32.gmra.mrb[0].mxu0 %v419
        %v496 = vpop.f32.mrb[0].mxu0
        %v497 = vadd.f32 %v424, %v496
        %v498 = vpop.f32.mrb[0].mxu0
        %499 = vdwg.mxu0
        %500 = vadd.xlane.f32.xlu0 %v492
        %v501 = vpop.xlane.xlu0 %500
        %502 = vadd.xlane.f32.xlu0 %v497
        %v503 = vpop.xlane.xlu0 %502
        %v504 = vmul.f32 %v492, %v492
        %v505 = vmul.f32 %v497, %v497
        %506 = vadd.xlane.f32.xlu0 %v504
        %v507 = vpop.xlane.xlu0 %506
        %508 = vadd.xlane.f32.xlu0 %v505
        %v509 = vpop.xlane.xlu0 %508
        %v510 = vmul.f32 %v501, 0.0078125
        %v511 = vmul.f32 %v503, 0.0078125
        %v512 = vmul.f32 %v507, 0.0078125
        %v513 = vmul.f32 %v509, 0.0078125
        %v514 = vmul.f32 %v510, %v510
        %v515 = vmul.f32 %v511, %v511
        %v516 = vsub.f32 %v512, %v514
        %v517 = vsub.f32 %v513, %v515
        %v518 = vmax.f32 %v516, 0.0
        %v519 = vmax.f32 %v517, 0.0
        %v520 = vsub.f32 %v492, %v510
        %v521 = vsub.f32 %v497, %v511
        %v522 = vadd.f32 %v518, 1e-05
        %v523 = vadd.f32 %v519, 1e-05
        %v524 = vrsqrt.pop %v522
        %v525 = vrsqrt.pop %v523
        %v526 = vmul.f32 %v520, %v524
        %v527 = vmul.f32 %v521, %v525
        %v528 = vld [vmem:[%s292 + $0x2] sm:$0x1]
        %v529 = vlaneseq
        %v530 = vshrl.u32 %v529, 7
        %v531 = vsub.s32 0, %v530
        %v532 = vrot.slane %v528, %v531
        %v533 = vmul.f32 %v526, %v532
        %v534 = vmul.f32 %v527, %v532
        %v535 = vld [vmem:[%s292 + $0x3] sm:$0x1]
        %v536 = vlaneseq
        %v537 = vshrl.u32 %v536, 7
        %v538 = vsub.s32 0, %v537
        %v539 = vrot.slane %v535, %v538
        %v540 = vadd.f32 %v533, %v539
        %v541 = vadd.f32 %v534, %v539
        %542 = vst [vmem:[%s298] sm:$0xff] %v540
        %543 = vst [vmem:[%s298 + $0x8] sm:$0xff] %v541
        %s544 = smul.u32 2, %s25
        %p545 = scmp.lt.s32.totalorder %s544, 9
        %s546 = scalar_select %p545, %s544, 9
        %s547 = smul.addr %s546, 8
        %s548 = scalar_lea.vmem %s5, %s547
        // Predicated region
        $region41: #{encoder_forward.1} parent=35 // pred_check
          %p549 = pneg %p153
        $region42: #{encoder_forward.1} parent=35 // pred_check_branch
          %551 = sbr.rel (%p549) target = $region44
        $region43: #{encoder_forward.1} parent=35 // pred_region
          %s552 = smul.u32 2, %s25
        $region44: #{encoder_forward.1} parent=35 // pred_fallthru
          _
      $region36: #{encoder_forward.1} parent=5 // pred_fallthru
        _
      %p553 = scmp.le.s32.totalorder 2, %s20
      // Predicated region
      $region45: #{encoder_forward.1} parent=5 // pred_check
        %p554 = pneg %p553
      $region46: #{encoder_forward.1} parent=5 // pred_check_branch
        %556 = sbr.rel (%p554) target = $region48
      $region47: #{encoder_forward.1} parent=5 // pred_region
        %s557 = ssub.s32 %s20, 2
        // Predicated region
        $region49: #{encoder_forward.1} parent=47 // pred_check
          %p558 = pneg %p159
        $region50: #{encoder_forward.1} parent=47 // pred_check_branch
          %560 = sbr.rel (%p558) target = $region52
        $region51: #{encoder_forward.1} parent=47 // pred_region
          %s561 = smul.u32 2, %s26
          %p562 = scmp.lt.s32.totalorder %s561, 9
          %s563 = scalar_select %p562, %s561, 9
          %s564 = smul.addr %s563, 8
          %s565 = scalar_lea.vmem %s5, %s564
        $region52: #{encoder_forward.1} parent=47 // pred_fallthru
          _
      $region48: #{encoder_forward.1} parent=5 // pred_fallthru
        _
    $region6: #{encoder_forward.1} parent=1 // loop_footer
      %s24 = sadd.s32 1, %s20
    $region7: #{encoder_forward.1} parent=1 // loop_footer_branch
      %19 = sbr.rel target = $region3
    $region8: #{encoder_forward.1} parent=1 // loop_exit
      _
    %566 = vsyncpa [#allocation5], 1
    %s567 = scalar_lea.sflag [#allocation5], 1
    %568 = vsyncpa %s567, 1

</llo_original>
